<compile_context>
chip_gen: v7x
topology: tpu7x:2x2x1
jax: 0.10.0
libtpu: 0.0.40
codegen_flags: <defaults>
</compile_context>

<pallas_src>
import functools

import jax
import jax.numpy as jnp
import numpy as np
from jax.experimental import pallas as pl
from jax.experimental.pallas import tpu as pltpu


def _soft_argmax_kernel(x_ref, idx_ref, *rest, window_type, window_width,
                        softmax_temp, W, HW):
    if window_type is None:
        (out_ref,) = rest
        planes_ref = None
    else:
        planes_ref, out_ref = rest

    x = x_ref[...]                                     # (Rt, HW) f32
    maxv = jnp.max(x, axis=1, keepdims=True)           # (Rt, 1)

    # --- numerically stable exp of x / temp (skip the scale when temp == 1) ---
    if softmax_temp == 1.0:
        e = jnp.exp(x - maxv)
    else:
        z = x * jnp.float32(1.0 / softmax_temp)
        zmax = jnp.max(z, axis=1, keepdims=True)
        e = jnp.exp(z - zmax)

    # --- radial window centered at the hard argmax (only when requested) ---
    if window_type is None:
        u = e
    else:
        flat = jax.lax.broadcasted_iota(jnp.int32, x.shape, 1)
        masked = jnp.where(x == maxv, flat, jnp.int32(HW))
        argmax = jnp.min(masked, axis=1, keepdims=True)        # (Rt, 1) int32
        ay_i = jax.lax.div(argmax, jnp.int32(W))               # argmax // W
        ax_i = argmax - ay_i * jnp.int32(W)                    # argmax %  W
        ax = ax_i.astype(jnp.float32)
        ay = ay_i.astype(jnp.float32)

        w_plane = planes_ref[0:1, :]                           # (1, HW)
        h_plane = planes_ref[1:2, :]                           # (1, HW)
        dx = w_plane - ax                                      # (Rt, HW)
        dy = h_plane - ay
        d2 = dx * dx + dy * dy
        hwidth = jnp.float32(float(window_width) / 2.0)
        if window_type == "Uniform":
            # squared-distance compare: no sqrt needed
            win = (d2 <= hwidth * hwidth).astype(jnp.float32)
        elif window_type == "Parzen":
            dists = jnp.sqrt(d2)
            dow = dists * jnp.float32(2.0 / float(window_width))  # dists/hwidth
            near_val = 1.0 - 6.0 * dow * dow * (1.0 - dow)
            tail_val = 2.0 * (1.0 - dow) ** 3
            win = jnp.where(dists <= hwidth * 0.5, near_val,
                            jnp.where(dists <= hwidth, tail_val,
                                      jnp.float32(0.0)))
        else:
            win = jnp.ones_like(e)
        u = e * win

    # --- fused normalization + expected coordinates (MXU matmul) ---
    denom = jnp.sum(u, axis=1, keepdims=True)                  # (Rt, 1)
    coords = jnp.dot(u, idx_ref[...],                          # (Rt, 2)
                     preferred_element_type=jnp.float32,
                     precision=jax.lax.Precision.HIGHEST)
    inv_denom = 1.0 / denom                                    # tiny (Rt, 1)
    xc = coords[:, 0:1] * inv_denom
    yc = coords[:, 1:2] * inv_denom

    valid = maxv > jnp.float32(0.01)
    zeros = jnp.zeros_like(xc)
    # single wide store: [x, y, 1, maxv]
    out_ref[...] = jnp.concatenate(
        [jnp.where(valid, xc, zeros),
         jnp.where(valid, yc, zeros),
         jnp.ones_like(xc),
         maxv], axis=1)


def _pick_rows(n, hw, max_bytes=2 * 1024 * 1024):
    """Rows per grid step: biggest multiple-of-8 divisor of n whose block
    (plus ~12 live full-tile f32 temporaries) stays within a modest VMEM budget
    (conservative for v7x's 64 MiB)."""
    per_row = hw * 4 * 12
    cap = max(1, max_bytes // per_row)
    if n <= cap:
        return n
    best = None
    for r in range(8, int(cap) + 1, 8):
        if n % r == 0:
            best = r
    return best if best is not None else n   # fallback: single big block


def soft_argmax_2d(x, *, base_index=0, step_size=1, window_fn=None,
                   window_width=10, softmax_temp=1.0):
    """Pallas SoftArgmax2D. x: (B, C, H, W). Returns (xys (B,3,C), maxv (B,C))."""
    x = x.astype(jnp.float32)
    B, C, H, W = x.shape
    HW = H * W
    N = B * C
    x2 = x.reshape(N, HW)                       # lane-dense: H*W on lane axis

    # constant index tables, built once in the wrapper (hoisted out of kernel)
    flat = np.arange(HW)
    wcol = (flat % W).astype(np.float32)
    hcol = (flat // W).astype(np.float32)
    idx_mat = jnp.asarray(
        np.stack([base_index + step_size * wcol,
                  base_index + step_size * hcol], axis=1))     # (HW, 2)

    Rt = _pick_rows(N, HW)
    grid = (N // Rt,)

    in_specs = [pl.BlockSpec((Rt, HW), lambda i: (i, 0)),
                pl.BlockSpec((HW, 2), lambda i: (0, 0))]
    args = [x2, idx_mat]
    if window_fn is not None:
        planes = jnp.asarray(np.stack([wcol, hcol], axis=0))   # (2, HW)
        in_specs.append(pl.BlockSpec((2, HW), lambda i: (0, 0)))
        args.append(planes)

    kernel = functools.partial(
        _soft_argmax_kernel, window_type=window_fn, window_width=window_width,
        softmax_temp=softmax_temp, W=W, HW=HW)

    out = pl.pallas_call(
        kernel,
        out_shape=jax.ShapeDtypeStruct((N, 4), jnp.float32),
        grid=grid,
        in_specs=in_specs,
        out_specs=pl.BlockSpec((Rt, 4), lambda i: (i, 0)),
        compiler_params=pltpu.CompilerParams(
            dimension_semantics=("parallel",)),
    )(*args)

    out = out.reshape(B, C, 4)
    xys = jnp.transpose(out[..., 0:3], (0, 2, 1))   # (B, 3, C)
    maxv = out[..., 3]                              # (B, C)
    return xys, maxv


def _reference_jax(x, *, base_index=0, step_size=1, window_fn=None,
                   window_width=10, softmax_temp=1.0):
    """Pure-JAX reference mirroring the PyTorch forward."""
    x = x.astype(jnp.float32)
    B, C, H, W = x.shape
    flat = x.reshape(B * C, H * W)
    maxv = jnp.max(flat, axis=1)
    argmax = jnp.argmax(flat, axis=1)
    ax = (argmax % W).astype(jnp.float32)
    ay = jnp.floor(argmax.astype(jnp.float32) / float(W))
    ws = jnp.arange(W, dtype=jnp.float32)
    hs = jnp.arange(H, dtype=jnp.float32)
    dx = ws[None, None, :] - ax[:, None, None]
    dy = hs[None, :, None] - ay[:, None, None]
    dists = jnp.sqrt(dx * dx + dy * dy)
    if window_fn == "Parzen":
        hw = window_width / 2.0
        dow = dists / hw
        near = (dists <= hw / 2.0).astype(jnp.float32)
        tail = ((dists > hw / 2.0) & (dists <= hw)).astype(jnp.float32)
        win = near * (1 - 6 * dow**2 * (1 - dow)) + tail * (2 * (1 - dow) ** 3)
    elif window_fn == "Uniform":
        win = (dists <= window_width / 2.0).astype(jnp.float32)
    else:
        win = jnp.ones_like(dists)
    win = win.reshape(B, C, H, W)
    sm = jax.nn.softmax(flat / softmax_temp, axis=1).reshape(B, C, H, W) * win
    sm = sm / jnp.sum(sm, axis=(2, 3), keepdims=True)
    xi = base_index + step_size * ws
    yi = base_index + step_size * hs
    xc = jnp.sum(jnp.sum(sm, axis=2) * xi, axis=2)
    yc = jnp.sum(jnp.sum(sm, axis=3) * yi, axis=2)
    xys = jnp.stack([xc, yc, jnp.ones_like(xc)], axis=1)  # (B, 3, C)
    maxv = maxv.reshape(B, 1, C)
    zero = jnp.zeros_like(xys).at[:, 2, :].set(1.0)
    xys = jnp.where(maxv > 0.01, xys, zero)
    return xys, maxv.reshape(B, C)


if __name__ == "__main__":
    key = jax.random.PRNGKey(0)
    B, C, H, W = 2, 4, 16, 16
    x = jax.random.normal(key, (B, C, H, W), dtype=jnp.float32)

    for wf in (None, "Parzen", "Uniform"):
        xys, maxv = soft_argmax_2d(x, window_fn=wf)
        jax.block_until_ready((xys, maxv))
        xys_ref, maxv_ref = _reference_jax(x, window_fn=wf)
        np.testing.assert_allclose(np.asarray(xys), np.asarray(xys_ref),
                                   rtol=1e-5, atol=1e-5)
        np.testing.assert_allclose(np.asarray(maxv), np.asarray(maxv_ref),
                                   rtol=1e-6, atol=1e-6)
        assert xys.shape == (B, 3, C) and maxv.shape == (B, C)

    print("KERNEL_OK")
</pallas_src>

<mosaic_0001>
module attributes {stable_mosaic.version = 11 : i64} {
  func.func @_soft_argmax_kernel(%arg0: i32, %arg1: memref<8x256xf32, #tpu.memory_space<vmem>>, %arg2: memref<256x2xf32, #tpu.memory_space<vmem>>, %arg3: memref<8x4xf32, #tpu.memory_space<vmem>>) attributes {dimension_semantics = [#tpu.dimension_semantics<parallel>], iteration_bounds = array<i64: 1>, scalar_prefetch = 0 : i64, scratch_operands = 0 : i64, tpu.core_type = #tpu.core_type<tc>, window_params = [{transform_indices = @transform_0, window_bounds = array<i64: 8, 256>}, {pipeline_mode = #tpu.pipeline_mode<synchronous>, transform_indices = @transform_1, window_bounds = array<i64: 256, 2>}, {transform_indices = @transform_2, window_bounds = array<i64: 8, 4>}]} {
    %c0 = arith.constant 0 : index
    %c0_0 = arith.constant 0 : index
    %0 = vector.load %arg1[%c0, %c0_0] : memref<8x256xf32, #tpu.memory_space<vmem>>, vector<8x256xf32>
    %cst = arith.constant dense<0xFF800000> : vector<8xf32>
    %1 = vector.multi_reduction <maximumf>, %0, %cst [1] : vector<8x256xf32> to vector<8xf32>
    %2 = vector.shape_cast %1 : vector<8xf32> to vector<8x1xf32>
    %3 = vector.broadcast %2 : vector<8x1xf32> to vector<8x256xf32>
    %4 = arith.subf %0, %3 : vector<8x256xf32>
    %5 = math.exp %4 : vector<8x256xf32>
    %cst_1 = arith.constant dense<0.000000e+00> : vector<8xf32>
    %6 = vector.multi_reduction <add>, %5, %cst_1 [1] : vector<8x256xf32> to vector<8xf32>
    %7 = vector.shape_cast %6 : vector<8xf32> to vector<8x1xf32>
    %c0_2 = arith.constant 0 : index
    %c0_3 = arith.constant 0 : index
    %8 = vector.load %arg2[%c0_2, %c0_3] : memref<256x2xf32, #tpu.memory_space<vmem>>, vector<256x2xf32>
    %cst_4 = arith.constant dense<0.000000e+00> : vector<8x2xf32>
    %9 = tpu.matmul %5, %8, %cst_4 {dimension_numbers = #tpu.dot_dimension_numbers<[1], [0], [0], [1], [0, 0, 1, 1], [], []>, precision = #tpu.contract_precision<fp32>} : vector<8x256xf32>, vector<256x2xf32>, vector<8x2xf32> -> vector<8x2xf32>
    %cst_5 = arith.constant 1.000000e+00 : f32
    %10 = vector.broadcast %cst_5 : f32 to vector<8x1xf32>
    %11 = arith.divf %10, %7 : vector<8x1xf32>
    %12 = vector.extract_strided_slice %9 {offsets = [0, 0], sizes = [8, 1], strides = [1, 1]} : vector<8x2xf32> to vector<8x1xf32>
    %13 = arith.mulf %12, %11 : vector<8x1xf32>
    %14 = vector.extract_strided_slice %9 {offsets = [0, 1], sizes = [8, 1], strides = [1, 1]} : vector<8x2xf32> to vector<8x1xf32>
    %15 = arith.mulf %14, %11 : vector<8x1xf32>
    %cst_6 = arith.constant 0.00999999977 : f32
    %16 = vector.broadcast %cst_6 : f32 to vector<8x1xf32>
    %17 = arith.cmpf ogt, %2, %16 : vector<8x1xf32>
    %cst_7 = arith.constant 0.000000e+00 : f32
    %18 = vector.broadcast %cst_7 : f32 to vector<8x1xf32>
    %19 = arith.select %17, %13, %18 : vector<8x1xi1>, vector<8x1xf32>
    %20 = arith.select %17, %15, %18 : vector<8x1xi1>, vector<8x1xf32>
    %cst_8 = arith.constant 1.000000e+00 : f32
    %21 = vector.broadcast %cst_8 : f32 to vector<8x1xf32>
    %22 = tpu.concatenate %19, %20, %21, %2 in 1 : vector<8x1xf32>, vector<8x1xf32>, vector<8x1xf32>, vector<8x1xf32> -> vector<8x4xf32>
    %c0_9 = arith.constant 0 : index
    %c0_10 = arith.constant 0 : index
    %23 = vector.load %arg3[%c0_9, %c0_10] : memref<8x4xf32, #tpu.memory_space<vmem>>, vector<8x4xf32>
    tpu.vector_store %arg3[%c0_9, %c0_10], %22 {strides = array<i32>} : memref<8x4xf32, #tpu.memory_space<vmem>>, vector<8x4xf32>,
    return
  }
  func.func @transform_0(%arg0: i32) -> (i32, i32) {
    %c0_i32 = arith.constant 0 : i32
    %c0_i32_0 = arith.constant 0 : i32
    return %arg0, %c0_i32 : i32, i32
  }
  func.func @transform_1(%arg0: i32) -> (i32, i32) {
    %c0_i32 = arith.constant 0 : i32
    %c0_i32_0 = arith.constant 0 : i32
    %c0_i32_1 = arith.constant 0 : i32
    return %c0_i32, %c0_i32_0 : i32, i32
  }
  func.func @transform_2(%arg0: i32) -> (i32, i32) {
    %c0_i32 = arith.constant 0 : i32
    %c0_i32_0 = arith.constant 0 : i32
    return %arg0, %c0_i32 : i32, i32
  }
}

</mosaic_0001>

<llo_original>
// kernel: tpu_custom_call.1
$region0: #{tpu_custom_call.1}
  #allocation0 [shape = 'u32[]', space=smem, size = 0x4, offset = 0x4, fixed_abs, tag = 'smem constant byte address 0x4 - core index']
  #allocation1 [shape = 'u32[144,128]{1,0:T(1,128)}', space=vmem, size = 0x12000, scoped, tag = 'internal scratch']
  %s0 = inlined_call_operand.vmem [shape: f32[8,256], index: 0, kind: input, shape index: {}]
  %s1 = inlined_call_operand.vmem [shape: f32[256,2], index: 1, kind: input, shape index: {}]
  %s2 = inlined_call_operand.vmem [shape: f32[8,4], index: 2, kind: output, shape index: {}]
  %s3 = sld [smem:[#allocation0]]
  $region18: #{tpu_custom_call.1} parent=0
    _
  %s5 = ssub.s32 1, %s3
  %s6 = scalar_select 0, %s5, %s3
  // Predicated region
  $region2: #{tpu_custom_call.1} parent=0 // pred_check
    _
  $region3: #{tpu_custom_call.1} parent=0 // pred_check_branch
    %8 = sbr.rel (0) target = $region5
  $region4: #{tpu_custom_call.1} parent=0 // pred_region
    _
  $region5: #{tpu_custom_call.1} parent=0 // pred_fallthru
    _
  // Predicated region
  $region6: #{tpu_custom_call.1} parent=0 // pred_check
    _
  $region7: #{tpu_custom_call.1} parent=0 // pred_check_branch
    %10 = sbr.rel (0) target = $region9
  $region8: #{tpu_custom_call.1} parent=0 // pred_region
    _
  $region9: #{tpu_custom_call.1} parent=0 // pred_fallthru
    _
  %v11 = vld [vmem:[%s0] sm:$0xff]
  %v12 = vld [vmem:[%s0 + $0x8] sm:$0xff]
  %v13 = vmax.f32 %v11, %v12
  %14 = vmax.xlane.f32.xlu0 %v13
  %v15 = vpop.xlane.xlu0 %14
  %v16 = vsub.f32 %v11, %v15
  %v17 = vsub.f32 %v12, %v15
  %v18 = vmul.f32 %v16, 1.442695
  %v19 = vpow.pop %v18
  %v20 = vmul.f32 %v17, 1.442695
  %v21 = vpow.pop %v20
  %v22 = vadd.f32 %v19, %v21
  %23 = vadd.xlane.f32.xlu0 %v22
  %v24 = vpop.xlane.xlu0 %23
  %v25 = vld [vmem:[%s1] sm:$0xff]
  %v26 = vld [vmem:[%s1 + $0x8] sm:$0xff]
  %v27 = vld [vmem:[%s1 + $0x10] sm:$0xff]
  %v28 = vld [vmem:[%s1 + $0x18] sm:$0xff]
  %v29 = vld [vmem:[%s1 + $0x20] sm:$0xff]
  %v30 = vld [vmem:[%s1 + $0x28] sm:$0xff]
  %v31 = vld [vmem:[%s1 + $0x30] sm:$0xff]
  %v32 = vld [vmem:[%s1 + $0x38] sm:$0xff]
  %v33 = vld [vmem:[%s1 + $0x40] sm:$0xff]
  %v34 = vld [vmem:[%s1 + $0x48] sm:$0xff]
  %v35 = vld [vmem:[%s1 + $0x50] sm:$0xff]
  %v36 = vld [vmem:[%s1 + $0x58] sm:$0xff]
  %v37 = vld [vmem:[%s1 + $0x60] sm:$0xff]
  %v38 = vld [vmem:[%s1 + $0x68] sm:$0xff]
  %v39 = vld [vmem:[%s1 + $0x70] sm:$0xff]
  %v40 = vld [vmem:[%s1 + $0x78] sm:$0xff]
  %v41 = vld [vmem:[%s1 + $0x80] sm:$0xff]
  %v42 = vld [vmem:[%s1 + $0x88] sm:$0xff]
  %v43 = vld [vmem:[%s1 + $0x90] sm:$0xff]
  %v44 = vld [vmem:[%s1 + $0x98] sm:$0xff]
  %v45 = vld [vmem:[%s1 + $0xa0] sm:$0xff]
  %v46 = vld [vmem:[%s1 + $0xa8] sm:$0xff]
  %v47 = vld [vmem:[%s1 + $0xb0] sm:$0xff]
  %v48 = vld [vmem:[%s1 + $0xb8] sm:$0xff]
  %v49 = vld [vmem:[%s1 + $0xc0] sm:$0xff]
  %v50 = vld [vmem:[%s1 + $0xc8] sm:$0xff]
  %v51 = vld [vmem:[%s1 + $0xd0] sm:$0xff]
  %v52 = vld [vmem:[%s1 + $0xd8] sm:$0xff]
  %v53 = vld [vmem:[%s1 + $0xe0] sm:$0xff]
  %v54 = vld [vmem:[%s1 + $0xe8] sm:$0xff]
  %v55 = vld [vmem:[%s1 + $0xf0] sm:$0xff]
  %v56 = vld [vmem:[%s1 + $0xf8] sm:$0xff]
  %57 = vmatprep.subr.mxu0 0.0
  %v58 = vand.u32 %v25, 4294901760
  %59 = vmatpush1.msra.mxu0 %v58
  %60 = vmatprep.subr.mxu0 0.0
  %v61 = vand.u32 %v26, 4294901760
  %62 = vmatpush1.msra.mxu0 %v61
  %63 = vmatprep.subr.mxu0 0.0
  %v64 = vand.u32 %v27, 4294901760
  %65 = vmatpush1.msra.mxu0 %v64
  %66 = vmatprep.subr.mxu0 0.0
  %v67 = vand.u32 %v28, 4294901760
  %68 = vmatpush1.msra.mxu0 %v67
  %69 = vmatprep.subr.mxu0 0.0
  %v70 = vand.u32 %v29, 4294901760
  %71 = vmatpush1.msra.mxu0 %v70
  %72 = vmatprep.subr.mxu0 0.0
  %v73 = vand.u32 %v30, 4294901760
  %74 = vmatpush1.msra.mxu0 %v73
  %75 = vmatprep.subr.mxu0 0.0
  %v76 = vand.u32 %v31, 4294901760
  %77 = vmatpush1.msra.mxu0 %v76
  %78 = vmatprep.subr.mxu0 0.0
  %v79 = vand.u32 %v32, 4294901760
  %80 = vmatpush1.msra.mxu0 %v79
  %81 = vmatprep.subr.mxu0 0.0
  %v82 = vand.u32 %v33, 4294901760
  %83 = vmatpush1.msra.mxu0 %v82
  %84 = vmatprep.subr.mxu0 0.0
  %v85 = vand.u32 %v34, 4294901760
  %86 = vmatpush1.msra.mxu0 %v85
  %87 = vmatprep.subr.mxu0 0.0
  %v88 = vand.u32 %v35, 4294901760
  %89 = vmatpush1.msra.mxu0 %v88
  %90 = vmatprep.subr.mxu0 0.0
  %v91 = vand.u32 %v36, 4294901760
  %92 = vmatpush1.msra.mxu0 %v91
  %93 = vmatprep.subr.mxu0 0.0
  %v94 = vand.u32 %v37, 4294901760
  %95 = vmatpush1.msra.mxu0 %v94
  %96 = vmatprep.subr.mxu0 0.0
  %v97 = vand.u32 %v38, 4294901760
  %98 = vmatpush1.msra.mxu0 %v97
  %99 = vmatprep.subr.mxu0 0.0
  %v100 = vand.u32 %v39, 4294901760
  %101 = vmatpush1.msra.mxu0 %v100
  %102 = vmatprep.subr.mxu0 0.0
  %v103 = vand.u32 %v40, 4294901760
  %104 = vmatpush1.msra.mxu0 %v103
  %105 = vmatprep.subr.mxu0 0.0
  %v106 = vand.u32 %v41, 4294901760
  %107 = vmatpush1.msra.mxu0 %v106
  %108 = vmatprep.subr.mxu0 0.0
  %v109 = vand.u32 %v42, 4294901760
  %110 = vmatpush1.msra.mxu0 %v109
  %111 = vmatprep.subr.mxu0 0.0
  %v112 = vand.u32 %v43, 4294901760
  %113 = vmatpush1.msra.mxu0 %v112
  %114 = vmatprep.subr.mxu0 0.0
  %v115 = vand.u32 %v44, 4294901760
  %116 = vmatpush1.msra.mxu0 %v115
  %117 = vmatprep.subr.mxu0 0.0
  %v118 = vand.u32 %v45, 4294901760
  %119 = vmatpush1.msra.mxu0 %v118
  %120 = vmatprep.subr.mxu0 0.0
  %v121 = vand.u32 %v46, 4294901760
  %122 = vmatpush1.msra.mxu0 %v121
  %123 = vmatprep.subr.mxu0 0.0
  %v124 = vand.u32 %v47, 4294901760
  %125 = vmatpush1.msra.mxu0 %v124
  %126 = vmatprep.subr.mxu0 0.0
  %v127 = vand.u32 %v48, 4294901760
  %128 = vmatpush1.msra.mxu0 %v127
  %129 = vmatprep.subr.mxu0 0.0
  %v130 = vand.u32 %v49, 4294901760
  %131 = vmatpush1.msra.mxu0 %v130
  %132 = vmatprep.subr.mxu0 0.0
  %v133 = vand.u32 %v50, 4294901760
  %134 = vmatpush1.msra.mxu0 %v133
  %135 = vmatprep.subr.mxu0 0.0
  %v136 = vand.u32 %v51, 4294901760
  %137 = vmatpush1.msra.mxu0 %v136
  %138 = vmatprep.subr.mxu0 0.0
  %v139 = vand.u32 %v52, 4294901760
  %140 = vmatpush1.msra.mxu0 %v139
  %141 = vmatprep.subr.mxu0 0.0
  %v142 = vand.u32 %v53, 4294901760
  %143 = vmatpush1.msra.mxu0 %v142
  %144 = vmatprep.subr.mxu0 0.0
  %v145 = vand.u32 %v54, 4294901760
  %146 = vmatpush1.msra.mxu0 %v145
  %147 = vmatprep.subr.mxu0 0.0
  %v148 = vand.u32 %v55, 4294901760
  %149 = vmatpush1.msra.mxu0 %v148
  %150 = vmatprep.subr.mxu0 0.0
  %v151 = vand.u32 %v56, 4294901760
  %152 = vmatpush1.msra.mxu0 %v151
  %v153 = vand.u32 %v21, 4294901760
  %v154 = vsub.f32 %v21, %v153
  %v155 = vand.u32 %v154, 4294901760
  %v156 = vsub.f32 %v154, %v155
  %v157 = vand.u32 %v156, 4294901760
  %158 = vmatprep.mubr.f32.mxu0 %v157
  %v159 = vand.u32 %v19, 4294901760
  %v160 = vsub.f32 %v19, %v159
  %v161 = vand.u32 %v160, 4294901760
  %v162 = vsub.f32 %v160, %v161
  %v163 = vand.u32 %v162, 4294901760
  %164 = vmatmul.mubr.f32.gmra.mrb[0].mxu0 %v163
  %v165 = vpop.f32.mrb[0].mxu0
  %v166 = vadd.f32 0.0, %v165
  %v167 = vpop.f32.mrb[0].mxu0
  %168 = vdwg.mxu0
  %169 = vmatprep.subr.mxu0 0.0
  %v170 = vand.u32 %v25, 4294901760
  %v171 = vsub.f32 %v25, %v170
  %v172 = vand.u32 %v171, 4294901760
  %v173 = vsub.f32 %v171, %v172
  %v174 = vand.u32 %v173, 4294901760
  %175 = vmatpush1.msra.mxu0 %v174
  %176 = vmatprep.subr.mxu0 0.0
  %v177 = vand.u32 %v26, 4294901760
  %v178 = vsub.f32 %v26, %v177
  %v179 = vand.u32 %v178, 4294901760
  %v180 = vsub.f32 %v178, %v179
  %v181 = vand.u32 %v180, 4294901760
  %182 = vmatpush1.msra.mxu0 %v181
  %183 = vmatprep.subr.mxu0 0.0
  %v184 = vand.u32 %v27, 4294901760
  %v185 = vsub.f32 %v27, %v184
  %v186 = vand.u32 %v185, 4294901760
  %v187 = vsub.f32 %v185, %v186
  %v188 = vand.u32 %v187, 4294901760
  %189 = vmatpush1.msra.mxu0 %v188
  %190 = vmatprep.subr.mxu0 0.0
  %v191 = vand.u32 %v28, 4294901760
  %v192 = vsub.f32 %v28, %v191
  %v193 = vand.u32 %v192, 4294901760
  %v194 = vsub.f32 %v192, %v193
  %v195 = vand.u32 %v194, 4294901760
  %196 = vmatpush1.msra.mxu0 %v195
  %197 = vmatprep.subr.mxu0 0.0
  %v198 = vand.u32 %v29, 4294901760
  %v199 = vsub.f32 %v29, %v198
  %v200 = vand.u32 %v199, 4294901760
  %v201 = vsub.f32 %v199, %v200
  %v202 = vand.u32 %v201, 4294901760
  %203 = vmatpush1.msra.mxu0 %v202
  %204 = vmatprep.subr.mxu0 0.0
  %v205 = vand.u32 %v30, 4294901760
  %v206 = vsub.f32 %v30, %v205
  %v207 = vand.u32 %v206, 4294901760
  %v208 = vsub.f32 %v206, %v207
  %v209 = vand.u32 %v208, 4294901760
  %210 = vmatpush1.msra.mxu0 %v209
  %211 = vmatprep.subr.mxu0 0.0
  %v212 = vand.u32 %v31, 4294901760
  %v213 = vsub.f32 %v31, %v212
  %v214 = vand.u32 %v213, 4294901760
  %v215 = vsub.f32 %v213, %v214
  %v216 = vand.u32 %v215, 4294901760
  %217 = vmatpush1.msra.mxu0 %v216
  %218 = vmatprep.subr.mxu0 0.0
  %v219 = vand.u32 %v32, 4294901760
  %v220 = vsub.f32 %v32, %v219
  %v221 = vand.u32 %v220, 4294901760
  %v222 = vsub.f32 %v220, %v221
  %v223 = vand.u32 %v222, 4294901760
  %224 = vmatpush1.msra.mxu0 %v223
  %225 = vmatprep.subr.mxu0 0.0
  %v226 = vand.u32 %v33, 4294901760
  %v227 = vsub.f32 %v33, %v226
  %v228 = vand.u32 %v227, 4294901760
  %v229 = vsub.f32 %v227, %v228
  %v230 = vand.u32 %v229, 4294901760
  %231 = vmatpush1.msra.mxu0 %v230
  %232 = vmatprep.subr.mxu0 0.0
  %v233 = vand.u32 %v34, 4294901760
  %v234 = vsub.f32 %v34, %v233
  %v235 = vand.u32 %v234, 4294901760
  %v236 = vsub.f32 %v234, %v235
  %v237 = vand.u32 %v236, 4294901760
  %238 = vmatpush1.msra.mxu0 %v237
  %239 = vmatprep.subr.mxu0 0.0
  %v240 = vand.u32 %v35, 4294901760
  %v241 = vsub.f32 %v35, %v240
  %v242 = vand.u32 %v241, 4294901760
  %v243 = vsub.f32 %v241, %v242
  %v244 = vand.u32 %v243, 4294901760
  %245 = vmatpush1.msra.mxu0 %v244
  %246 = vmatprep.subr.mxu0 0.0
  %v247 = vand.u32 %v36, 4294901760
  %v248 = vsub.f32 %v36, %v247
  %v249 = vand.u32 %v248, 4294901760
  %v250 = vsub.f32 %v248, %v249
  %v251 = vand.u32 %v250, 4294901760
  %252 = vmatpush1.msra.mxu0 %v251
  %253 = vmatprep.subr.mxu0 0.0
  %v254 = vand.u32 %v37, 4294901760
  %v255 = vsub.f32 %v37, %v254
  %v256 = vand.u32 %v255, 4294901760
  %v257 = vsub.f32 %v255, %v256
  %v258 = vand.u32 %v257, 4294901760
  %259 = vmatpush1.msra.mxu0 %v258
  %260 = vmatprep.subr.mxu0 0.0
  %v261 = vand.u32 %v38, 4294901760
  %v262 = vsub.f32 %v38, %v261
  %v263 = vand.u32 %v262, 4294901760
  %v264 = vsub.f32 %v262, %v263
  %v265 = vand.u32 %v264, 4294901760
  %266 = vmatpush1.msra.mxu0 %v265
  %267 = vmatprep.subr.mxu0 0.0
  %v268 = vand.u32 %v39, 4294901760
  %v269 = vsub.f32 %v39, %v268
  %v270 = vand.u32 %v269, 4294901760
  %v271 = vsub.f32 %v269, %v270
  %v272 = vand.u32 %v271, 4294901760
  %273 = vmatpush1.msra.mxu0 %v272
  %274 = vmatprep.subr.mxu0 0.0
  %v275 = vand.u32 %v40, 4294901760
  %v276 = vsub.f32 %v40, %v275
  %v277 = vand.u32 %v276, 4294901760
  %v278 = vsub.f32 %v276, %v277
  %v279 = vand.u32 %v278, 4294901760
  %280 = vmatpush1.msra.mxu0 %v279
  %281 = vmatprep.subr.mxu0 0.0
  %v282 = vand.u32 %v41, 4294901760
  %v283 = vsub.f32 %v41, %v282
  %v284 = vand.u32 %v283, 4294901760
  %v285 = vsub.f32 %v283, %v284
  %v286 = vand.u32 %v285, 4294901760
  %287 = vmatpush1.msra.mxu0 %v286
  %288 = vmatprep.subr.mxu0 0.0
  %v289 = vand.u32 %v42, 4294901760
  %v290 = vsub.f32 %v42, %v289
  %v291 = vand.u32 %v290, 4294901760
  %v292 = vsub.f32 %v290, %v291
  %v293 = vand.u32 %v292, 4294901760
  %294 = vmatpush1.msra.mxu0 %v293
  %295 = vmatprep.subr.mxu0 0.0
  %v296 = vand.u32 %v43, 4294901760
  %v297 = vsub.f32 %v43, %v296
  %v298 = vand.u32 %v297, 4294901760
  %v299 = vsub.f32 %v297, %v298
  %v300 = vand.u32 %v299, 4294901760
  %301 = vmatpush1.msra.mxu0 %v300
  %302 = vmatprep.subr.mxu0 0.0
  %v303 = vand.u32 %v44, 4294901760
  %v304 = vsub.f32 %v44, %v303
  %v305 = vand.u32 %v304, 4294901760
  %v306 = vsub.f32 %v304, %v305
  %v307 = vand.u32 %v306, 4294901760
  %308 = vmatpush1.msra.mxu0 %v307
  %309 = vmatprep.subr.mxu0 0.0
  %v310 = vand.u32 %v45, 4294901760
  %v311 = vsub.f32 %v45, %v310
  %v312 = vand.u32 %v311, 4294901760
  %v313 = vsub.f32 %v311, %v312
  %v314 = vand.u32 %v313, 4294901760
  %315 = vmatpush1.msra.mxu0 %v314
  %316 = vmatprep.subr.mxu0 0.0
  %v317 = vand.u32 %v46, 4294901760
  %v318 = vsub.f32 %v46, %v317
  %v319 = vand.u32 %v318, 4294901760
  %v320 = vsub.f32 %v318, %v319
  %v321 = vand.u32 %v320, 4294901760
  %322 = vmatpush1.msra.mxu0 %v321
  %323 = vmatprep.subr.mxu0 0.0
  %v324 = vand.u32 %v47, 4294901760
  %v325 = vsub.f32 %v47, %v324
  %v326 = vand.u32 %v325, 4294901760
  %v327 = vsub.f32 %v325, %v326
  %v328 = vand.u32 %v327, 4294901760
  %329 = vmatpush1.msra.mxu0 %v328
  %330 = vmatprep.subr.mxu0 0.0
  %v331 = vand.u32 %v48, 4294901760
  %v332 = vsub.f32 %v48, %v331
  %v333 = vand.u32 %v332, 4294901760
  %v334 = vsub.f32 %v332, %v333
  %v335 = vand.u32 %v334, 4294901760
  %336 = vmatpush1.msra.mxu0 %v335
  %337 = vmatprep.subr.mxu0 0.0
  %v338 = vand.u32 %v49, 4294901760
  %v339 = vsub.f32 %v49, %v338
  %v340 = vand.u32 %v339, 4294901760
  %v341 = vsub.f32 %v339, %v340
  %v342 = vand.u32 %v341, 4294901760
  %343 = vmatpush1.msra.mxu0 %v342
  %344 = vmatprep.subr.mxu0 0.0
  %v345 = vand.u32 %v50, 4294901760
  %v346 = vsub.f32 %v50, %v345
  %v347 = vand.u32 %v346, 4294901760
  %v348 = vsub.f32 %v346, %v347
  %v349 = vand.u32 %v348, 4294901760
  %350 = vmatpush1.msra.mxu0 %v349
  %351 = vmatprep.subr.mxu0 0.0
  %v352 = vand.u32 %v51, 4294901760
  %v353 = vsub.f32 %v51, %v352
  %v354 = vand.u32 %v353, 4294901760
  %v355 = vsub.f32 %v353, %v354
  %v356 = vand.u32 %v355, 4294901760
  %357 = vmatpush1.msra.mxu0 %v356
  %358 = vmatprep.subr.mxu0 0.0
  %v359 = vand.u32 %v52, 4294901760
  %v360 = vsub.f32 %v52, %v359
  %v361 = vand.u32 %v360, 4294901760
  %v362 = vsub.f32 %v360, %v361
  %v363 = vand.u32 %v362, 4294901760
  %364 = vmatpush1.msra.mxu0 %v363
  %365 = vmatprep.subr.mxu0 0.0
  %v366 = vand.u32 %v53, 4294901760
  %v367 = vsub.f32 %v53, %v366
  %v368 = vand.u32 %v367, 4294901760
  %v369 = vsub.f32 %v367, %v368
  %v370 = vand.u32 %v369, 4294901760
  %371 = vmatpush1.msra.mxu0 %v370
  %372 = vmatprep.subr.mxu0 0.0
  %v373 = vand.u32 %v54, 4294901760
  %v374 = vsub.f32 %v54, %v373
  %v375 = vand.u32 %v374, 4294901760
  %v376 = vsub.f32 %v374, %v375
  %v377 = vand.u32 %v376, 4294901760
  %378 = vmatpush1.msra.mxu0 %v377
  %379 = vmatprep.subr.mxu0 0.0
  %v380 = vand.u32 %v55, 4294901760
  %v381 = vsub.f32 %v55, %v380
  %v382 = vand.u32 %v381, 4294901760
  %v383 = vsub.f32 %v381, %v382
  %v384 = vand.u32 %v383, 4294901760
  %385 = vmatpush1.msra.mxu0 %v384
  %386 = vmatprep.subr.mxu0 0.0
  %v387 = vand.u32 %v56, 4294901760
  %v388 = vsub.f32 %v56, %v387
  %v389 = vand.u32 %v388, 4294901760
  %v390 = vsub.f32 %v388, %v389
  %v391 = vand.u32 %v390, 4294901760
  %392 = vmatpush1.msra.mxu0 %v391
  %v393 = vand.u32 %v21, 4294901760
  %394 = vmatprep.mubr.f32.mxu0 %v393
  %v395 = vand.u32 %v19, 4294901760
  %396 = vmatmul.mubr.f32.gmra.mrb[0].mxu0 %v395
  %v397 = vpop.f32.mrb[0].mxu0
  %v398 = vadd.f32 %v166, %v397
  %v399 = vpop.f32.mrb[0].mxu0
  %400 = vdwg.mxu0
  %401 = vmatprep.subr.mxu0 0.0
  %v402 = vand.u32 %v25, 4294901760
  %v403 = vsub.f32 %v25, %v402
  %404 = vmatpush1.msra.mxu0 %v403
  %405 = vmatprep.subr.mxu0 0.0
  %v406 = vand.u32 %v26, 4294901760
  %v407 = vsub.f32 %v26, %v406
  %408 = vmatpush1.msra.mxu0 %v407
  %409 = vmatprep.subr.mxu0 0.0
  %v410 = vand.u32 %v27, 4294901760
  %v411 = vsub.f32 %v27, %v410
  %412 = vmatpush1.msra.mxu0 %v411
  %413 = vmatprep.subr.mxu0 0.0
  %v414 = vand.u32 %v28, 4294901760
  %v415 = vsub.f32 %v28, %v414
  %416 = vmatpush1.msra.mxu0 %v415
  %417 = vmatprep.subr.mxu0 0.0
  %v418 = vand.u32 %v29, 4294901760
  %v419 = vsub.f32 %v29, %v418
  %420 = vmatpush1.msra.mxu0 %v419
  %421 = vmatprep.subr.mxu0 0.0
  %v422 = vand.u32 %v30, 4294901760
  %v423 = vsub.f32 %v30, %v422
  %424 = vmatpush1.msra.mxu0 %v423
  %425 = vmatprep.subr.mxu0 0.0
  %v426 = vand.u32 %v31, 4294901760
  %v427 = vsub.f32 %v31, %v426
  %428 = vmatpush1.msra.mxu0 %v427
  %429 = vmatprep.subr.mxu0 0.0
  %v430 = vand.u32 %v32, 4294901760
  %v431 = vsub.f32 %v32, %v430
  %432 = vmatpush1.msra.mxu0 %v431
  %433 = vmatprep.subr.mxu0 0.0
  %v434 = vand.u32 %v33, 4294901760
  %v435 = vsub.f32 %v33, %v434
  %436 = vmatpush1.msra.mxu0 %v435
  %437 = vmatprep.subr.mxu0 0.0
  %v438 = vand.u32 %v34, 4294901760
  %v439 = vsub.f32 %v34, %v438
  %440 = vmatpush1.msra.mxu0 %v439
  %441 = vmatprep.subr.mxu0 0.0
  %v442 = vand.u32 %v35, 4294901760
  %v443 = vsub.f32 %v35, %v442
  %444 = vmatpush1.msra.mxu0 %v443
  %445 = vmatprep.subr.mxu0 0.0
  %v446 = vand.u32 %v36, 4294901760
  %v447 = vsub.f32 %v36, %v446
  %448 = vmatpush1.msra.mxu0 %v447
  %449 = vmatprep.subr.mxu0 0.0
  %v450 = vand.u32 %v37, 4294901760
  %v451 = vsub.f32 %v37, %v450
  %452 = vmatpush1.msra.mxu0 %v451
  %453 = vmatprep.subr.mxu0 0.0
  %v454 = vand.u32 %v38, 4294901760
  %v455 = vsub.f32 %v38, %v454
  %456 = vmatpush1.msra.mxu0 %v455
  %457 = vmatprep.subr.mxu0 0.0
  %v458 = vand.u32 %v39, 4294901760
  %v459 = vsub.f32 %v39, %v458
  %460 = vmatpush1.msra.mxu0 %v459
  %461 = vmatprep.subr.mxu0 0.0
  %v462 = vand.u32 %v40, 4294901760
  %v463 = vsub.f32 %v40, %v462
  %464 = vmatpush1.msra.mxu0 %v463
  %465 = vmatprep.subr.mxu0 0.0
  %v466 = vand.u32 %v41, 4294901760
  %v467 = vsub.f32 %v41, %v466
  %468 = vmatpush1.msra.mxu0 %v467
  %469 = vmatprep.subr.mxu0 0.0
  %v470 = vand.u32 %v42, 4294901760
  %v471 = vsub.f32 %v42, %v470
  %472 = vmatpush1.msra.mxu0 %v471
  %473 = vmatprep.subr.mxu0 0.0
  %v474 = vand.u32 %v43, 4294901760
  %v475 = vsub.f32 %v43, %v474
  %476 = vmatpush1.msra.mxu0 %v475
  %477 = vmatprep.subr.mxu0 0.0
  %v478 = vand.u32 %v44, 4294901760
  %v479 = vsub.f32 %v44, %v478
  %480 = vmatpush1.msra.mxu0 %v479
  %481 = vmatprep.subr.mxu0 0.0
  %v482 = vand.u32 %v45, 4294901760
  %v483 = vsub.f32 %v45, %v482
  %484 = vmatpush1.msra.mxu0 %v483
  %485 = vmatprep.subr.mxu0 0.0
  %v486 = vand.u32 %v46, 4294901760
  %v487 = vsub.f32 %v46, %v486
  %488 = vmatpush1.msra.mxu0 %v487
  %489 = vmatprep.subr.mxu0 0.0
  %v490 = vand.u32 %v47, 4294901760
  %v491 = vsub.f32 %v47, %v490
  %492 = vmatpush1.msra.mxu0 %v491
  %493 = vmatprep.subr.mxu0 0.0
  %v494 = vand.u32 %v48, 4294901760
  %v495 = vsub.f32 %v48, %v494
  %496 = vmatpush1.msra.mxu0 %v495
  %497 = vmatprep.subr.mxu0 0.0
  %v498 = vand.u32 %v49, 4294901760
  %v499 = vsub.f32 %v49, %v498
  %500 = vmatpush1.msra.mxu0 %v499
  %501 = vmatprep.subr.mxu0 0.0
  %v502 = vand.u32 %v50, 4294901760
  %v503 = vsub.f32 %v50, %v502
  %504 = vmatpush1.msra.mxu0 %v503
  %505 = vmatprep.subr.mxu0 0.0
  %v506 = vand.u32 %v51, 4294901760
  %v507 = vsub.f32 %v51, %v506
  %508 = vmatpush1.msra.mxu0 %v507
  %509 = vmatprep.subr.mxu0 0.0
  %v510 = vand.u32 %v52, 4294901760
  %v511 = vsub.f32 %v52, %v510
  %512 = vmatpush1.msra.mxu0 %v511
  %513 = vmatprep.subr.mxu0 0.0
  %v514 = vand.u32 %v53, 4294901760
  %v515 = vsub.f32 %v53, %v514
  %516 = vmatpush1.msra.mxu0 %v515
  %517 = vmatprep.subr.mxu0 0.0
  %v518 = vand.u32 %v54, 4294901760
  %v519 = vsub.f32 %v54, %v518
  %520 = vmatpush1.msra.mxu0 %v519
  %521 = vmatprep.subr.mxu0 0.0
  %v522 = vand.u32 %v55, 4294901760
  %v523 = vsub.f32 %v55, %v522
  %524 = vmatpush1.msra.mxu0 %v523
  %525 = vmatprep.subr.mxu0 0.0
  %v526 = vand.u32 %v56, 4294901760
  %v527 = vsub.f32 %v56, %v526
  %528 = vmatpush1.msra.mxu0 %v527
  %v529 = vand.u32 %v21, 4294901760
  %v530 = vsub.f32 %v21, %v529
  %531 = vmatprep.mubr.f32.mxu0 %v530
  %v532 = vand.u32 %v19, 4294901760
  %v533 = vsub.f32 %v19, %v532
  %534 = vmatmul.mubr.f32.gmra.mrb[0].mxu0 %v533
  %v535 = vpop.f32.mrb[0].mxu0
  %v536 = vadd.f32 %v398, %v535
  %v537 = vpop.f32.mrb[0].mxu0
  %538 = vdwg.mxu0
  %539 = vmatprep.subr.mxu0 0.0
  %v540 = vand.u32 %v25, 4294901760
  %541 = vmatpush1.msra.mxu0 %v540
  %542 = vmatprep.subr.mxu0 0.0
  %v543 = vand.u32 %v26, 4294901760
  %544 = vmatpush1.msra.mxu0 %v543
  %545 = vmatprep.subr.mxu0 0.0
  %v546 = vand.u32 %v27, 4294901760
  %547 = vmatpush1.msra.mxu0 %v546
  %548 = vmatprep.subr.mxu0 0.0
  %v549 = vand.u32 %v28, 4294901760
  %550 = vmatpush1.msra.mxu0 %v549
  %551 = vmatprep.subr.mxu0 0.0
  %v552 = vand.u32 %v29, 4294901760
  %553 = vmatpush1.msra.mxu0 %v552
  %554 = vmatprep.subr.mxu0 0.0
  %v555 = vand.u32 %v30, 4294901760
  %556 = vmatpush1.msra.mxu0 %v555
  %557 = vmatprep.subr.mxu0 0.0
  %v558 = vand.u32 %v31, 4294901760
  %559 = vmatpush1.msra.mxu0 %v558
  %560 = vmatprep.subr.mxu0 0.0
  %v561 = vand.u32 %v32, 4294901760
  %562 = vmatpush1.msra.mxu0 %v561
  %563 = vmatprep.subr.mxu0 0.0
  %v564 = vand.u32 %v33, 4294901760
  %565 = vmatpush1.msra.mxu0 %v564
  %566 = vmatprep.subr.mxu0 0.0
  %v567 = vand.u32 %v34, 4294901760
  %568 = vmatpush1.msra.mxu0 %v567
  %569 = vmatprep.subr.mxu0 0.0
  %v570 = vand.u32 %v35, 4294901760
  %571 = vmatpush1.msra.mxu0 %v570
  %572 = vmatprep.subr.mxu0 0.0
  %v573 = vand.u32 %v36, 4294901760
  %574 = vmatpush1.msra.mxu0 %v573
  %575 = vmatprep.subr.mxu0 0.0
  %v576 = vand.u32 %v37, 4294901760
  %577 = vmatpush1.msra.mxu0 %v576
  %578 = vmatprep.subr.mxu0 0.0
  %v579 = vand.u32 %v38, 4294901760
  %580 = vmatpush1.msra.mxu0 %v579
  %581 = vmatprep.subr.mxu0 0.0
  %v582 = vand.u32 %v39, 4294901760
  %583 = vmatpush1.msra.mxu0 %v582
  %584 = vmatprep.subr.mxu0 0.0
  %v585 = vand.u32 %v40, 4294901760
  %586 = vmatpush1.msra.mxu0 %v585
  %587 = vmatprep.subr.mxu0 0.0
  %v588 = vand.u32 %v41, 4294901760
  %589 = vmatpush1.msra.mxu0 %v588
  %590 = vmatprep.subr.mxu0 0.0
  %v591 = vand.u32 %v42, 4294901760
  %592 = vmatpush1.msra.mxu0 %v591
  %593 = vmatprep.subr.mxu0 0.0
  %v594 = vand.u32 %v43, 4294901760
  %595 = vmatpush1.msra.mxu0 %v594
  %596 = vmatprep.subr.mxu0 0.0
  %v597 = vand.u32 %v44, 4294901760
  %598 = vmatpush1.msra.mxu0 %v597
  %599 = vmatprep.subr.mxu0 0.0
  %v600 = vand.u32 %v45, 4294901760
  %601 = vmatpush1.msra.mxu0 %v600
  %602 = vmatprep.subr.mxu0 0.0
  %v603 = vand.u32 %v46, 4294901760
  %604 = vmatpush1.msra.mxu0 %v603
  %605 = vmatprep.subr.mxu0 0.0
  %v606 = vand.u32 %v47, 4294901760
  %607 = vmatpush1.msra.mxu0 %v606
  %608 = vmatprep.subr.mxu0 0.0
  %v609 = vand.u32 %v48, 4294901760
  %610 = vmatpush1.msra.mxu0 %v609
  %611 = vmatprep.subr.mxu0 0.0
  %v612 = vand.u32 %v49, 4294901760
  %613 = vmatpush1.msra.mxu0 %v612
  %614 = vmatprep.subr.mxu0 0.0
  %v615 = vand.u32 %v50, 4294901760
  %616 = vmatpush1.msra.mxu0 %v615
  %617 = vmatprep.subr.mxu0 0.0
  %v618 = vand.u32 %v51, 4294901760
  %619 = vmatpush1.msra.mxu0 %v618
  %620 = vmatprep.subr.mxu0 0.0
  %v621 = vand.u32 %v52, 4294901760
  %622 = vmatpush1.msra.mxu0 %v621
  %623 = vmatprep.subr.mxu0 0.0
  %v624 = vand.u32 %v53, 4294901760
  %625 = vmatpush1.msra.mxu0 %v624
  %626 = vmatprep.subr.mxu0 0.0
  %v627 = vand.u32 %v54, 4294901760
  %628 = vmatpush1.msra.mxu0 %v627
  %629 = vmatprep.subr.mxu0 0.0
  %v630 = vand.u32 %v55, 4294901760
  %631 = vmatpush1.msra.mxu0 %v630
  %632 = vmatprep.subr.mxu0 0.0
  %v633 = vand.u32 %v56, 4294901760
  %634 = vmatpush1.msra.mxu0 %v633
  %v635 = vand.u32 %v21, 4294901760
  %v636 = vsub.f32 %v21, %v635
  %v637 = vand.u32 %v636, 4294901760
  %638 = vmatprep.mubr.f32.mxu0 %v637
  %v639 = vand.u32 %v19, 4294901760
  %v640 = vsub.f32 %v19, %v639
  %v641 = vand.u32 %v640, 4294901760
  %642 = vmatmul.mubr.f32.gmra.mrb[0].mxu0 %v641
  %v643 = vpop.f32.mrb[0].mxu0
  %v644 = vadd.f32 %v536, %v643
  %v645 = vpop.f32.mrb[0].mxu0
  %646 = vdwg.mxu0
  %647 = vmatprep.subr.mxu0 0.0
  %v648 = vand.u32 %v25, 4294901760
  %v649 = vsub.f32 %v25, %v648
  %v650 = vand.u32 %v649, 4294901760
  %651 = vmatpush1.msra.mxu0 %v650
  %652 = vmatprep.subr.mxu0 0.0
  %v653 = vand.u32 %v26, 4294901760
  %v654 = vsub.f32 %v26, %v653
  %v655 = vand.u32 %v654, 4294901760
  %656 = vmatpush1.msra.mxu0 %v655
  %657 = vmatprep.subr.mxu0 0.0
  %v658 = vand.u32 %v27, 4294901760
  %v659 = vsub.f32 %v27, %v658
  %v660 = vand.u32 %v659, 4294901760
  %661 = vmatpush1.msra.mxu0 %v660
  %662 = vmatprep.subr.mxu0 0.0
  %v663 = vand.u32 %v28, 4294901760
  %v664 = vsub.f32 %v28, %v663
  %v665 = vand.u32 %v664, 4294901760
  %666 = vmatpush1.msra.mxu0 %v665
  %667 = vmatprep.subr.mxu0 0.0
  %v668 = vand.u32 %v29, 4294901760
  %v669 = vsub.f32 %v29, %v668
  %v670 = vand.u32 %v669, 4294901760
  %671 = vmatpush1.msra.mxu0 %v670
  %672 = vmatprep.subr.mxu0 0.0
  %v673 = vand.u32 %v30, 4294901760
  %v674 = vsub.f32 %v30, %v673
  %v675 = vand.u32 %v674, 4294901760
  %676 = vmatpush1.msra.mxu0 %v675
  %677 = vmatprep.subr.mxu0 0.0
  %v678 = vand.u32 %v31, 4294901760
  %v679 = vsub.f32 %v31, %v678
  %v680 = vand.u32 %v679, 4294901760
  %681 = vmatpush1.msra.mxu0 %v680
  %682 = vmatprep.subr.mxu0 0.0
  %v683 = vand.u32 %v32, 4294901760
  %v684 = vsub.f32 %v32, %v683
  %v685 = vand.u32 %v684, 4294901760
  %686 = vmatpush1.msra.mxu0 %v685
  %687 = vmatprep.subr.mxu0 0.0
  %v688 = vand.u32 %v33, 4294901760
  %v689 = vsub.f32 %v33, %v688
  %v690 = vand.u32 %v689, 4294901760
  %691 = vmatpush1.msra.mxu0 %v690
  %692 = vmatprep.subr.mxu0 0.0
  %v693 = vand.u32 %v34, 4294901760
  %v694 = vsub.f32 %v34, %v693
  %v695 = vand.u32 %v694, 4294901760
  %696 = vmatpush1.msra.mxu0 %v695
  %697 = vmatprep.subr.mxu0 0.0
  %v698 = vand.u32 %v35, 4294901760
  %v699 = vsub.f32 %v35, %v698
  %v700 = vand.u32 %v699, 4294901760
  %701 = vmatpush1.msra.mxu0 %v700
  %702 = vmatprep.subr.mxu0 0.0
  %v703 = vand.u32 %v36, 4294901760
  %v704 = vsub.f32 %v36, %v703
  %v705 = vand.u32 %v704, 4294901760
  %706 = vmatpush1.msra.mxu0 %v705
  %707 = vmatprep.subr.mxu0 0.0
  %v708 = vand.u32 %v37, 4294901760
  %v709 = vsub.f32 %v37, %v708
  %v710 = vand.u32 %v709, 4294901760
  %711 = vmatpush1.msra.mxu0 %v710
  %712 = vmatprep.subr.mxu0 0.0
  %v713 = vand.u32 %v38, 4294901760
  %v714 = vsub.f32 %v38, %v713
  %v715 = vand.u32 %v714, 4294901760
  %716 = vmatpush1.msra.mxu0 %v715
  %717 = vmatprep.subr.mxu0 0.0
  %v718 = vand.u32 %v39, 4294901760
  %v719 = vsub.f32 %v39, %v718
  %v720 = vand.u32 %v719, 4294901760
  %721 = vmatpush1.msra.mxu0 %v720
  %722 = vmatprep.subr.mxu0 0.0
  %v723 = vand.u32 %v40, 4294901760
  %v724 = vsub.f32 %v40, %v723
  %v725 = vand.u32 %v724, 4294901760
  %726 = vmatpush1.msra.mxu0 %v725
  %727 = vmatprep.subr.mxu0 0.0
  %v728 = vand.u32 %v41, 4294901760
  %v729 = vsub.f32 %v41, %v728
  %v730 = vand.u32 %v729, 4294901760
  %731 = vmatpush1.msra.mxu0 %v730
  %732 = vmatprep.subr.mxu0 0.0
  %v733 = vand.u32 %v42, 4294901760
  %v734 = vsub.f32 %v42, %v733
  %v735 = vand.u32 %v734, 4294901760
  %736 = vmatpush1.msra.mxu0 %v735
  %737 = vmatprep.subr.mxu0 0.0
  %v738 = vand.u32 %v43, 4294901760
  %v739 = vsub.f32 %v43, %v738
  %v740 = vand.u32 %v739, 4294901760
  %741 = vmatpush1.msra.mxu0 %v740
  %742 = vmatprep.subr.mxu0 0.0
  %v743 = vand.u32 %v44, 4294901760
  %v744 = vsub.f32 %v44, %v743
  %v745 = vand.u32 %v744, 4294901760
  %746 = vmatpush1.msra.mxu0 %v745
  %747 = vmatprep.subr.mxu0 0.0
  %v748 = vand.u32 %v45, 4294901760
  %v749 = vsub.f32 %v45, %v748
  %v750 = vand.u32 %v749, 4294901760
  %751 = vmatpush1.msra.mxu0 %v750
  %752 = vmatprep.subr.mxu0 0.0
  %v753 = vand.u32 %v46, 4294901760
  %v754 = vsub.f32 %v46, %v753
  %v755 = vand.u32 %v754, 4294901760
  %756 = vmatpush1.msra.mxu0 %v755
  %757 = vmatprep.subr.mxu0 0.0
  %v758 = vand.u32 %v47, 4294901760
  %v759 = vsub.f32 %v47, %v758
  %v760 = vand.u32 %v759, 4294901760
  %761 = vmatpush1.msra.mxu0 %v760
  %762 = vmatprep.subr.mxu0 0.0
  %v763 = vand.u32 %v48, 4294901760
  %v764 = vsub.f32 %v48, %v763
  %v765 = vand.u32 %v764, 4294901760
  %766 = vmatpush1.msra.mxu0 %v765
  %767 = vmatprep.subr.mxu0 0.0
  %v768 = vand.u32 %v49, 4294901760
  %v769 = vsub.f32 %v49, %v768
  %v770 = vand.u32 %v769, 4294901760
  %771 = vmatpush1.msra.mxu0 %v770
  %772 = vmatprep.subr.mxu0 0.0
  %v773 = vand.u32 %v50, 4294901760
  %v774 = vsub.f32 %v50, %v773
  %v775 = vand.u32 %v774, 4294901760
  %776 = vmatpush1.msra.mxu0 %v775
  %777 = vmatprep.subr.mxu0 0.0
  %v778 = vand.u32 %v51, 4294901760
  %v779 = vsub.f32 %v51, %v778
  %v780 = vand.u32 %v779, 4294901760
  %781 = vmatpush1.msra.mxu0 %v780
  %782 = vmatprep.subr.mxu0 0.0
  %v783 = vand.u32 %v52, 4294901760
  %v784 = vsub.f32 %v52, %v783
  %v785 = vand.u32 %v784, 4294901760
  %786 = vmatpush1.msra.mxu0 %v785
  %787 = vmatprep.subr.mxu0 0.0
  %v788 = vand.u32 %v53, 4294901760
  %v789 = vsub.f32 %v53, %v788
  %v790 = vand.u32 %v789, 4294901760
  %791 = vmatpush1.msra.mxu0 %v790
  %792 = vmatprep.subr.mxu0 0.0
  %v793 = vand.u32 %v54, 4294901760
  %v794 = vsub.f32 %v54, %v793
  %v795 = vand.u32 %v794, 4294901760
  %796 = vmatpush1.msra.mxu0 %v795
  %797 = vmatprep.subr.mxu0 0.0
  %v798 = vand.u32 %v55, 4294901760
  %v799 = vsub.f32 %v55, %v798
  %v800 = vand.u32 %v799, 4294901760
  %801 = vmatpush1.msra.mxu0 %v800
  %802 = vmatprep.subr.mxu0 0.0
  %v803 = vand.u32 %v56, 4294901760
  %v804 = vsub.f32 %v56, %v803
  %v805 = vand.u32 %v804, 4294901760
  %806 = vmatpush1.msra.mxu0 %v805
  %v807 = vand.u32 %v21, 4294901760
  %808 = vmatprep.mubr.f32.mxu0 %v807
  %v809 = vand.u32 %v19, 4294901760
  %810 = vmatmul.mubr.f32.gmra.mrb[0].mxu0 %v809
  %v811 = vpop.f32.mrb[0].mxu0
  %v812 = vadd.f32 %v644, %v811
  %v813 = vpop.f32.mrb[0].mxu0
  %814 = vdwg.mxu0
  %815 = vmatprep.subr.mxu0 0.0
  %v816 = vand.u32 %v25, 4294901760
  %817 = vmatpush1.msra.mxu0 %v816
  %818 = vmatprep.subr.mxu0 0.0
  %v819 = vand.u32 %v26, 4294901760
  %820 = vmatpush1.msra.mxu0 %v819
  %821 = vmatprep.subr.mxu0 0.0
  %v822 = vand.u32 %v27, 4294901760
  %823 = vmatpush1.msra.mxu0 %v822
  %824 = vmatprep.subr.mxu0 0.0
  %v825 = vand.u32 %v28, 4294901760
  %826 = vmatpush1.msra.mxu0 %v825
  %827 = vmatprep.subr.mxu0 0.0
  %v828 = vand.u32 %v29, 4294901760
  %829 = vmatpush1.msra.mxu0 %v828
  %830 = vmatprep.subr.mxu0 0.0
  %v831 = vand.u32 %v30, 4294901760
  %832 = vmatpush1.msra.mxu0 %v831
  %833 = vmatprep.subr.mxu0 0.0
  %v834 = vand.u32 %v31, 4294901760
  %835 = vmatpush1.msra.mxu0 %v834
  %836 = vmatprep.subr.mxu0 0.0
  %v837 = vand.u32 %v32, 4294901760
  %838 = vmatpush1.msra.mxu0 %v837
  %839 = vmatprep.subr.mxu0 0.0
  %v840 = vand.u32 %v33, 4294901760
  %841 = vmatpush1.msra.mxu0 %v840
  %842 = vmatprep.subr.mxu0 0.0
  %v843 = vand.u32 %v34, 4294901760
  %844 = vmatpush1.msra.mxu0 %v843
  %845 = vmatprep.subr.mxu0 0.0
  %v846 = vand.u32 %v35, 4294901760
  %847 = vmatpush1.msra.mxu0 %v846
  %848 = vmatprep.subr.mxu0 0.0
  %v849 = vand.u32 %v36, 4294901760
  %850 = vmatpush1.msra.mxu0 %v849
  %851 = vmatprep.subr.mxu0 0.0
  %v852 = vand.u32 %v37, 4294901760
  %853 = vmatpush1.msra.mxu0 %v852
  %854 = vmatprep.subr.mxu0 0.0
  %v855 = vand.u32 %v38, 4294901760
  %856 = vmatpush1.msra.mxu0 %v855
  %857 = vmatprep.subr.mxu0 0.0
  %v858 = vand.u32 %v39, 4294901760
  %859 = vmatpush1.msra.mxu0 %v858
  %860 = vmatprep.subr.mxu0 0.0
  %v861 = vand.u32 %v40, 4294901760
  %862 = vmatpush1.msra.mxu0 %v861
  %863 = vmatprep.subr.mxu0 0.0
  %v864 = vand.u32 %v41, 4294901760
  %865 = vmatpush1.msra.mxu0 %v864
  %866 = vmatprep.subr.mxu0 0.0
  %v867 = vand.u32 %v42, 4294901760
  %868 = vmatpush1.msra.mxu0 %v867
  %869 = vmatprep.subr.mxu0 0.0
  %v870 = vand.u32 %v43, 4294901760
  %871 = vmatpush1.msra.mxu0 %v870
  %872 = vmatprep.subr.mxu0 0.0
  %v873 = vand.u32 %v44, 4294901760
  %874 = vmatpush1.msra.mxu0 %v873
  %875 = vmatprep.subr.mxu0 0.0
  %v876 = vand.u32 %v45, 4294901760
  %877 = vmatpush1.msra.mxu0 %v876
  %878 = vmatprep.subr.mxu0 0.0
  %v879 = vand.u32 %v46, 4294901760
  %880 = vmatpush1.msra.mxu0 %v879
  %881 = vmatprep.subr.mxu0 0.0
  %v882 = vand.u32 %v47, 4294901760
  %883 = vmatpush1.msra.mxu0 %v882
  %884 = vmatprep.subr.mxu0 0.0
  %v885 = vand.u32 %v48, 4294901760
  %886 = vmatpush1.msra.mxu0 %v885
  %887 = vmatprep.subr.mxu0 0.0
  %v888 = vand.u32 %v49, 4294901760
  %889 = vmatpush1.msra.mxu0 %v888
  %890 = vmatprep.subr.mxu0 0.0
  %v891 = vand.u32 %v50, 4294901760
  %892 = vmatpush1.msra.mxu0 %v891
  %893 = vmatprep.subr.mxu0 0.0
  %v894 = vand.u32 %v51, 4294901760
  %895 = vmatpush1.msra.mxu0 %v894
  %896 = vmatprep.subr.mxu0 0.0
  %v897 = vand.u32 %v52, 4294901760
  %898 = vmatpush1.msra.mxu0 %v897
  %899 = vmatprep.subr.mxu0 0.0
  %v900 = vand.u32 %v53, 4294901760
  %901 = vmatpush1.msra.mxu0 %v900
  %902 = vmatprep.subr.mxu0 0.0
  %v903 = vand.u32 %v54, 4294901760
  %904 = vmatpush1.msra.mxu0 %v903
  %905 = vmatprep.subr.mxu0 0.0
  %v906 = vand.u32 %v55, 4294901760
  %907 = vmatpush1.msra.mxu0 %v906
  %908 = vmatprep.subr.mxu0 0.0
  %v909 = vand.u32 %v56, 4294901760
  %910 = vmatpush1.msra.mxu0 %v909
  %v911 = vand.u32 %v21, 4294901760
  %912 = vmatprep.mubr.f32.mxu0 %v911
  %v913 = vand.u32 %v19, 4294901760
  %914 = vmatmul.mubr.f32.gmra.mrb[0].mxu0 %v913
  %v915 = vpop.f32.mrb[0].mxu0
  %v916 = vadd.f32 %v812, %v915
  %v917 = vpop.f32.mrb[0].mxu0
  %918 = vdwg.mxu0
  %v919 = vrcp.pop %v24
  %v920 = vmul.f32 1.0, %v919
  %v921 = vmul.f32 %v916, %v920
  %vm922 = vcmp.gt.f32.partialorder %v15, 0.01
  %v923 = vsel %vm922, %v921, 0.0
  %vm924 = vcmask 15360
  %v925 = vsel %vm924, %v923, 1.0
  %vm926 = vcmask 23552
  %v927 = vsel %vm926, %v925, %v15
  %vm928 = vcmask 31744
  %929 = vst.msk [vmem:[%s2] sm:$0xff] %vm928, %v927
  // Predicated region
  $region10: #{tpu_custom_call.1} parent=0 // pred_check
    _
  $region11: #{tpu_custom_call.1} parent=0 // pred_check_branch
    %931 = sbr.rel (0) target = $region13
  $region12: #{tpu_custom_call.1} parent=0 // pred_region
    _
  $region13: #{tpu_custom_call.1} parent=0 // pred_fallthru
    _
  // Predicated region
  $region14: #{tpu_custom_call.1} parent=0 // pred_check
    _
  $region15: #{tpu_custom_call.1} parent=0 // pred_check_branch
    %933 = sbr.rel (0) target = $region17
  $region16: #{tpu_custom_call.1} parent=0 // pred_region
    _
  $region17: #{tpu_custom_call.1} parent=0 // pred_fallthru
    _

</llo_original>
